<compile_context>
chip_gen: v7x
topology: tpu7x:2x2x1
jax: 0.10.0
libtpu: 0.0.40
codegen_flags: <defaults>
</compile_context>

<pallas_src>
import functools
from types import SimpleNamespace

import jax
import jax.numpy as jnp
from jax.experimental import pallas as pl
from jax.experimental.pallas import tpu as pltpu


# ---------------------------------------------------------------------------
# Pallas kernel: per-level raw focal-loss sum + raw huber-loss sum
#   logits  : [G, C, L]   (G = tile of B*A anchor groups, L = H*W on lanes)
#   targets : [G, 1, L]   int32 class ids (-1 ignore, -2 excluded)
#   box_out : [G, 4, L]
#   box_tgt : [G, 4, L]
# Outputs are *unnormalized* sums; division by num_positives_sum happens in JAX.
# ---------------------------------------------------------------------------
def _detection_loss_level_kernel(logits_ref, tgt_ref, box_out_ref, box_tgt_ref,
                                 cls_sum_ref, box_sum_ref, acc_ref,
                                 *, alpha, gamma, delta, smooth_rate,
                                 num_classes):
    i = pl.program_id(0)
    n_steps = pl.num_programs(0)

    @pl.when(i == 0)
    def _init():
        acc_ref[0] = 0.0
        acc_ref[1] = 0.0

    # ---------------- classification / focal loss ----------------
    x = logits_ref[...].astype(jnp.float32)            # [G, C, L]
    tgt = tgt_ref[...]                                  # [G, 1, L] int32

    cls_ids = jax.lax.broadcasted_iota(jnp.int32, x.shape, 1)
    pos = jnp.logical_and(cls_ids == tgt, tgt >= 0)     # one-hot positions

    # label smoothing with num_cls = num_classes + 1 (matches reference)
    base = smooth_rate / (num_classes + 1.0)
    t = jnp.where(pos, 1.0 - smooth_rate + base, base)

    # softplus(-x), computed once and reused (stable form)
    sp_neg = jnp.maximum(-x, 0.0) + jnp.log(1.0 + jnp.exp(-jnp.abs(x)))
    ce = sp_neg + x * (1.0 - t)                          # BCE-with-logits
    modulator = jnp.exp(-gamma * (t * x + sp_neg))       # == exp(g*t*(-x) - g*softplus(-x))
    focal = modulator * ce * jnp.where(pos, alpha, 1.0 - alpha)
    focal = jnp.where(tgt != -2, focal, 0.0)             # exclude -2 anchors
    acc_ref[0] += jnp.sum(focal)

    # ---------------- box regression / huber loss ----------------
    bo = box_out_ref[...].astype(jnp.float32)            # [G, 4, L]
    bt = box_tgt_ref[...].astype(jnp.float32)
    abs_err = jnp.abs(bt - bo)                            # huber(input=targets, target=outputs)
    quad = jnp.minimum(abs_err, delta)
    hub = 0.5 * quad * quad + delta * (abs_err - quad)
    acc_ref[1] += jnp.sum(jnp.where(bt != 0.0, hub, 0.0))

    @pl.when(i == n_steps - 1)
    def _finalize():
        cls_sum_ref[0] = acc_ref[0]
        box_sum_ref[0] = acc_ref[1]


def _largest_divisor_leq(n, cap):
    cap = max(1, min(n, int(cap)))
    for d in range(cap, 0, -1):
        if n % d == 0:
            return d
    return 1


def _level_raw_sums(cls_out_nchw, box_out_nchw, cls_tgt, box_tgt,
                    num_classes, alpha, gamma, delta, max_group_tile=None):
    b, ac, h, w = cls_out_nchw.shape
    a = cls_tgt.shape[-1]
    c = num_classes
    assert ac == a * c
    L = h * w
    ba = b * a

    # Free reshapes of the NCHW conv outputs (no data movement).
    logits = cls_out_nchw.reshape(ba, c, L)
    box_o = box_out_nchw.reshape(ba, 4, L)
    # Only the (small) targets get transposed to the NCHW-native layout.
    tgt = jnp.transpose(cls_tgt, (0, 3, 1, 2)).reshape(ba, 1, L).astype(jnp.int32)
    box_t = jnp.transpose(box_tgt, (0, 3, 1, 2)).reshape(ba, 4, L)

    # Tile the group axis so a double-buffered tile set stays ~<= 8 MiB
    # (comfortably under v7x 32 MiB scoped / 64 MiB physical VMEM).
    per_group_bytes = 4 * L * (c + 1 + 4 + 4)
    budget_bytes = 4 * 1024 * 1024
    g_cap = max(1, budget_bytes // per_group_bytes)
    if max_group_tile is not None:
        g_cap = min(g_cap, max_group_tile)
    g = _largest_divisor_leq(ba, g_cap)
    num_tiles = ba // g

    kernel = functools.partial(_detection_loss_level_kernel,
                               alpha=alpha, gamma=gamma, delta=delta,
                               smooth_rate=0.1, num_classes=c)

    cls_raw, box_raw = pl.pallas_call(
        kernel,
        out_shape=(jax.ShapeDtypeStruct((1,), jnp.float32),
                   jax.ShapeDtypeStruct((1,), jnp.float32)),
        grid=(num_tiles,),
        in_specs=[pl.BlockSpec((g, c, L), lambda i: (i, 0, 0)),
                  pl.BlockSpec((g, 1, L), lambda i: (i, 0, 0)),
                  pl.BlockSpec((g, 4, L), lambda i: (i, 0, 0)),
                  pl.BlockSpec((g, 4, L), lambda i: (i, 0, 0))],
        out_specs=(pl.BlockSpec((1,), lambda i: (0,),
                                memory_space=pltpu.MemorySpace.SMEM),
                   pl.BlockSpec((1,), lambda i: (0,),
                                memory_space=pltpu.MemorySpace.SMEM)),
        scratch_shapes=[pltpu.SMEM((2,), jnp.float32)],
        compiler_params=pltpu.CompilerParams(
            dimension_semantics=("arbitrary",),
            vmem_limit_bytes=32 * 1024 * 1024),
    )(logits, tgt, box_o, box_t)
    return cls_raw[0], box_raw[0]


class DetectionLossPallas:
    """Pallas implementation of DetectionLoss.forward.

    Note: `use_iou_loss` / anchors / IouLoss are stored by the PyTorch module's
    __init__ but never used in forward(), so they are intentionally omitted here.
    """

    def __init__(self, config, anchors=None, use_iou_loss=True,
                 max_group_tile=None):
        self.num_classes = config.num_classes
        self.alpha = config.alpha
        self.gamma = config.gamma
        self.delta = config.delta
        self.box_loss_weight = config.box_loss_weight
        self.use_iou_loss = use_iou_loss
        self.anchors = anchors  # unused in forward (matches reference)
        self.max_group_tile = max_group_tile

    def __call__(self, cls_outputs, box_outputs, cls_targets, box_targets,
                 num_positives):
        num_positives_sum = jnp.sum(num_positives) + 1.0
        cls_raws, box_raws = [], []
        for l in range(len(cls_outputs)):
            cr, br = _level_raw_sums(cls_outputs[l], box_outputs[l],
                                     cls_targets[l], box_targets[l],
                                     self.num_classes, self.alpha, self.gamma,
                                     self.delta, self.max_group_tile)
            cls_raws.append(cr)
            box_raws.append(br)
        inv_nps = 1.0 / num_positives_sum                 # hoisted normalization
        cls_loss = jnp.sum(jnp.stack(cls_raws)) * inv_nps
        box_loss = jnp.sum(jnp.stack(box_raws)) * (inv_nps * 0.25)
        total_loss = cls_loss + self.box_loss_weight * box_loss
        return total_loss, cls_loss, box_loss


# ---------------------------------------------------------------------------
# Pure-JAX reference (mirrors PyTorch semantics) used for a sanity check
# ---------------------------------------------------------------------------
def _ref_forward(cfg, cls_outputs, box_outputs, cls_targets, box_targets,
                 num_positives):
    nps = jnp.sum(num_positives) + 1.0
    cls_losses, box_losses = [], []
    for l in range(len(cls_outputs)):
        b, _, h, w = cls_outputs[l].shape
        a = cls_targets[l].shape[-1]
        c = cfg.num_classes
        tgt = cls_targets[l]                                        # [B,H,W,A]
        onehot = (jnp.arange(c)[None, None, None, None, :] == tgt[..., None])
        onehot = (onehot & (tgt[..., None] >= 0)).astype(jnp.float32)
        logits = jnp.transpose(cls_outputs[l], (0, 2, 3, 1)).reshape(b, h, w, a * c)
        t = onehot.reshape(b, h, w, a * c)
        pos = t == 1.0
        t_s = t * 0.9 + 0.1 / (c + 1)
        ce = (jnp.maximum(logits, 0.0) - logits * t_s
              + jnp.log(1.0 + jnp.exp(-jnp.abs(logits))))
        mod = jnp.exp(cfg.gamma * t_s * (-logits)
                      - cfg.gamma * jnp.log(1.0 + jnp.exp(-logits)))
        loss = mod * ce
        wl = jnp.where(pos, cfg.alpha * loss, (1.0 - cfg.alpha) * loss) / nps
        wl = wl.reshape(b, h, w, a, c) * (tgt != -2)[..., None].astype(jnp.float32)
        cls_losses.append(jnp.sum(wl))

        bo = jnp.transpose(box_outputs[l], (0, 2, 3, 1))
        bt = box_targets[l]
        mask = (bt != 0.0).astype(jnp.float32)
        abs_err = jnp.abs(bt - bo)
        quad = jnp.minimum(abs_err, cfg.delta)
        hl = 0.5 * quad * quad + cfg.delta * (abs_err - quad)
        box_losses.append(jnp.sum(hl * mask) / (nps * 4.0))
    cls_loss = jnp.sum(jnp.stack(cls_losses))
    box_loss = jnp.sum(jnp.stack(box_losses))
    return cls_loss + cfg.box_loss_weight * box_loss, cls_loss, box_loss


if __name__ == "__main__":
    cfg = SimpleNamespace(num_classes=8, alpha=0.25, gamma=2.0, delta=0.1,
                          box_loss_weight=50.0)
    B, A = 2, 3
    level_hw = [(8, 8), (4, 4)]

    key = jax.random.PRNGKey(0)
    keys = iter(jax.random.split(key, 4 * len(level_hw) + 1))

    cls_outputs, box_outputs, cls_targets, box_targets = [], [], [], []
    for (h, w) in level_hw:
        cls_outputs.append(jax.random.normal(next(keys),
                                             (B, A * cfg.num_classes, h, w),
                                             dtype=jnp.float32))
        box_outputs.append(jax.random.normal(next(keys), (B, A * 4, h, w),
                                             dtype=jnp.float32))
        cls_targets.append(jax.random.randint(next(keys), (B, h, w, A),
                                              minval=-2, maxval=cfg.num_classes,
                                              dtype=jnp.int32))
        kbt = next(keys)
        bt = jax.random.normal(kbt, (B, h, w, A * 4), dtype=jnp.float32)
        zero_mask = jax.random.bernoulli(jax.random.fold_in(kbt, 1), 0.3,
                                         (B, h, w, A * 4))
        box_targets.append(jnp.where(zero_mask, 0.0, bt))
    num_positives = jnp.array([3.0, 5.0], dtype=jnp.float32)

    ref_total, ref_cls, ref_box = _ref_forward(cfg, cls_outputs, box_outputs,
                                               cls_targets, box_targets,
                                               num_positives)

    # Run once with the default (single-tile) grid and once with a small group
    # tile to exercise the multi-step accumulation / pipelining path.
    for mg in (None, 2):
        loss_fn = DetectionLossPallas(cfg, anchors=None, use_iou_loss=True,
                                      max_group_tile=mg)
        total, cls_l, box_l = loss_fn(cls_outputs, box_outputs, cls_targets,
                                      box_targets, num_positives)
        jax.block_until_ready((total, cls_l, box_l))
        assert jnp.allclose(total, ref_total, rtol=1e-3, atol=1e-4), (mg, total, ref_total)
        assert jnp.allclose(cls_l, ref_cls, rtol=1e-3, atol=1e-4), (mg, cls_l, ref_cls)
        assert jnp.allclose(box_l, ref_box, rtol=1e-3, atol=1e-4), (mg, box_l, ref_box)

    print("KERNEL_OK")
</pallas_src>

<mosaic_0001>
module attributes {stable_mosaic.version = 11 : i64} {
  func.func @_detection_loss_level_kernel(%arg0: i32, %arg1: memref<6x8x64xf32, #tpu.memory_space<vmem>>, %arg2: memref<6x1x64xi32, #tpu.memory_space<vmem>>, %arg3: memref<6x4x64xf32, #tpu.memory_space<vmem>>, %arg4: memref<6x4x64xf32, #tpu.memory_space<vmem>>, %arg5: memref<1xf32, #tpu.memory_space<smem>>, %arg6: memref<1xf32, #tpu.memory_space<smem>>, %arg7: memref<2xf32, #tpu.memory_space<smem>>) attributes {dimension_semantics = [#tpu.dimension_semantics<arbitrary>], iteration_bounds = array<i64: 1>, scalar_prefetch = 0 : i64, scratch_operands = 1 : i64, tpu.core_type = #tpu.core_type<tc>, window_params = [{transform_indices = @transform_0, window_bounds = array<i64: 6, 8, 64>}, {transform_indices = @transform_1, window_bounds = array<i64: 6, 1, 64>}, {transform_indices = @transform_2, window_bounds = array<i64: 6, 4, 64>}, {transform_indices = @transform_3, window_bounds = array<i64: 6, 4, 64>}, {transform_indices = @transform_4, window_bounds = array<i64: 1>}, {transform_indices = @transform_5, window_bounds = array<i64: 1>}]} {
    %c0_i32 = arith.constant 0 : i32
    %0 = arith.cmpi eq, %arg0, %c0_i32 : i32
    %1 = arith.extui %0 : i1 to i32
    %c0_i32_0 = arith.constant 0 : i32
    %2 = arith.cmpi ne, %1, %c0_i32_0 : i32
    scf.if %2 {
      %cst_35 = arith.constant 0.000000e+00 : f32
      %c0_36 = arith.constant 0 : index
      %81 = memref.load %arg7[%c0_36] : memref<2xf32, #tpu.memory_space<smem>>
      memref.store %cst_35, %arg7[%c0_36] : memref<2xf32, #tpu.memory_space<smem>>
      %cst_37 = arith.constant 0.000000e+00 : f32
      %c1_38 = arith.constant 1 : index
      %82 = memref.load %arg7[%c1_38] : memref<2xf32, #tpu.memory_space<smem>>
      memref.store %cst_37, %arg7[%c1_38] : memref<2xf32, #tpu.memory_space<smem>>
    } else {
    }
    %c0 = arith.constant 0 : index
    %c0_1 = arith.constant 0 : index
    %c0_2 = arith.constant 0 : index
    %3 = vector.load %arg1[%c0, %c0_1, %c0_2] : memref<6x8x64xf32, #tpu.memory_space<vmem>>, vector<6x8x64xf32>
    %c0_3 = arith.constant 0 : index
    %c0_4 = arith.constant 0 : index
    %c0_5 = arith.constant 0 : index
    %4 = vector.load %arg2[%c0_3, %c0_4, %c0_5] : memref<6x1x64xi32, #tpu.memory_space<vmem>>, vector<6x1x64xi32>
    %5 = tpu.iota {dimensions = array<i32: 1>} : vector<6x8x64xi32>
    %6 = vector.broadcast %4 : vector<6x1x64xi32> to vector<6x8x64xi32>
    %7 = arith.cmpi eq, %5, %6 : vector<6x8x64xi32>
    %c0_i32_6 = arith.constant 0 : i32
    %8 = vector.broadcast %c0_i32_6 : i32 to vector<6x1x64xi32>
    %9 = arith.cmpi sge, %4, %8 : vector<6x1x64xi32>
    %10 = vector.broadcast %9 : vector<6x1x64xi1> to vector<6x8x64xi1>
    %11 = arith.andi %7, %10 : vector<6x8x64xi1>
    %cst = arith.constant 0.911111116 : f32
    %cst_7 = arith.constant 0.0111111114 : f32
    %12 = vector.broadcast %cst : f32 to vector<6x8x64xf32>
    %13 = vector.broadcast %cst_7 : f32 to vector<6x8x64xf32>
    %14 = arith.select %11, %12, %13 : vector<6x8x64xi1>, vector<6x8x64xf32>
    %cst_8 = arith.constant 0.000000e+00 : f32
    %15 = vector.broadcast %cst_8 : f32 to vector<6x8x64xf32>
    %16 = arith.subf %15, %3 : vector<6x8x64xf32>
    %cst_9 = arith.constant 0.000000e+00 : f32
    %17 = vector.broadcast %cst_9 : f32 to vector<6x8x64xf32>
    %18 = arith.maximumf %16, %17 : vector<6x8x64xf32>
    %19 = math.absf %3 : vector<6x8x64xf32>
    %cst_10 = arith.constant 0.000000e+00 : f32
    %20 = vector.broadcast %cst_10 : f32 to vector<6x8x64xf32>
    %21 = arith.subf %20, %19 : vector<6x8x64xf32>
    %22 = math.exp %21 : vector<6x8x64xf32>
    %cst_11 = arith.constant 1.000000e+00 : f32
    %23 = vector.broadcast %cst_11 : f32 to vector<6x8x64xf32>
    %24 = arith.addf %23, %22 : vector<6x8x64xf32>
    %25 = math.log %24 : vector<6x8x64xf32>
    %26 = arith.addf %18, %25 : vector<6x8x64xf32>
    %cst_12 = arith.constant 1.000000e+00 : f32
    %27 = vector.broadcast %cst_12 : f32 to vector<6x8x64xf32>
    %28 = arith.subf %27, %14 : vector<6x8x64xf32>
    %29 = arith.mulf %3, %28 : vector<6x8x64xf32>
    %30 = arith.addf %26, %29 : vector<6x8x64xf32>
    %31 = arith.mulf %14, %3 : vector<6x8x64xf32>
    %32 = arith.addf %31, %26 : vector<6x8x64xf32>
    %cst_13 = arith.constant -2.000000e+00 : f32
    %33 = vector.broadcast %cst_13 : f32 to vector<6x8x64xf32>
    %34 = arith.mulf %33, %32 : vector<6x8x64xf32>
    %35 = math.exp %34 : vector<6x8x64xf32>
    %36 = arith.mulf %35, %30 : vector<6x8x64xf32>
    %cst_14 = arith.constant 2.500000e-01 : f32
    %cst_15 = arith.constant 7.500000e-01 : f32
    %37 = vector.broadcast %cst_14 : f32 to vector<6x8x64xf32>
    %38 = vector.broadcast %cst_15 : f32 to vector<6x8x64xf32>
    %39 = arith.select %11, %37, %38 : vector<6x8x64xi1>, vector<6x8x64xf32>
    %40 = arith.mulf %36, %39 : vector<6x8x64xf32>
    %c-2_i32 = arith.constant -2 : i32
    %41 = vector.broadcast %c-2_i32 : i32 to vector<6x1x64xi32>
    %42 = arith.cmpi ne, %4, %41 : vector<6x1x64xi32>
    %cst_16 = arith.constant 0.000000e+00 : f32
    %43 = vector.shape_cast %42 : vector<6x1x64xi1> to vector<6x1x64xi1>
    %44 = vector.broadcast %43 : vector<6x1x64xi1> to vector<6x8x64xi1>
    %45 = vector.broadcast %cst_16 : f32 to vector<6x8x64xf32>
    %46 = arith.select %44, %40, %45 : vector<6x8x64xi1>, vector<6x8x64xf32>
    %c0_17 = arith.constant 0 : index
    %47 = memref.load %arg7[%c0_17] : memref<2xf32, #tpu.memory_space<smem>>
    %48 = vector.shape_cast %46 : vector<6x8x64xf32> to vector<1x6x8x64xf32>
    %cst_18 = arith.constant dense<0.000000e+00> : vector<1xf32>
    %49 = vector.multi_reduction <add>, %48, %cst_18 [1, 2, 3] : vector<1x6x8x64xf32> to vector<1xf32>
    %50 = vector.shape_cast %49 : vector<1xf32> to vector<1x1x1x1xf32>
    %51 = vector.extract %50[0, 0, 0, 0] : f32 from vector<1x1x1x1xf32>
    %52 = arith.addf %47, %51 : f32
    %c0_19 = arith.constant 0 : index
    %53 = memref.load %arg7[%c0_19] : memref<2xf32, #tpu.memory_space<smem>>
    memref.store %52, %arg7[%c0_19] : memref<2xf32, #tpu.memory_space<smem>>
    %c0_20 = arith.constant 0 : index
    %c0_21 = arith.constant 0 : index
    %c0_22 = arith.constant 0 : index
    %54 = vector.load %arg3[%c0_20, %c0_21, %c0_22] : memref<6x4x64xf32, #tpu.memory_space<vmem>>, vector<6x4x64xf32>
    %c0_23 = arith.constant 0 : index
    %c0_24 = arith.constant 0 : index
    %c0_25 = arith.constant 0 : index
    %55 = vector.load %arg4[%c0_23, %c0_24, %c0_25] : memref<6x4x64xf32, #tpu.memory_space<vmem>>, vector<6x4x64xf32>
    %56 = arith.subf %55, %54 : vector<6x4x64xf32>
    %57 = math.absf %56 : vector<6x4x64xf32>
    %cst_26 = arith.constant 1.000000e-01 : f32
    %58 = vector.broadcast %cst_26 : f32 to vector<6x4x64xf32>
    %59 = arith.minimumf %57, %58 : vector<6x4x64xf32>
    %cst_27 = arith.constant 5.000000e-01 : f32
    %60 = vector.broadcast %cst_27 : f32 to vector<6x4x64xf32>
    %61 = arith.mulf %60, %59 : vector<6x4x64xf32>
    %62 = arith.mulf %61, %59 : vector<6x4x64xf32>
    %63 = arith.subf %57, %59 : vector<6x4x64xf32>
    %cst_28 = arith.constant 1.000000e-01 : f32
    %64 = vector.broadcast %cst_28 : f32 to vector<6x4x64xf32>
    %65 = arith.mulf %64, %63 : vector<6x4x64xf32>
    %66 = arith.addf %62, %65 : vector<6x4x64xf32>
    %c1 = arith.constant 1 : index
    %67 = memref.load %arg7[%c1] : memref<2xf32, #tpu.memory_space<smem>>
    %cst_29 = arith.constant 0.000000e+00 : f32
    %68 = vector.broadcast %cst_29 : f32 to vector<6x4x64xf32>
    %69 = arith.cmpf one, %55, %68 : vector<6x4x64xf32>
    %cst_30 = arith.constant 0.000000e+00 : f32
    %70 = vector.broadcast %cst_30 : f32 to vector<6x4x64xf32>
    %71 = arith.select %69, %66, %70 : vector<6x4x64xi1>, vector<6x4x64xf32>
    %72 = vector.shape_cast %71 : vector<6x4x64xf32> to vector<1x6x4x64xf32>
    %cst_31 = arith.constant dense<0.000000e+00> : vector<1xf32>
    %73 = vector.multi_reduction <add>, %72, %cst_31 [1, 2, 3] : vector<1x6x4x64xf32> to vector<1xf32>
    %74 = vector.shape_cast %73 : vector<1xf32> to vector<1x1x1x1xf32>
    %75 = vector.extract %74[0, 0, 0, 0] : f32 from vector<1x1x1x1xf32>
    %76 = arith.addf %67, %75 : f32
    %c1_32 = arith.constant 1 : index
    %77 = memref.load %arg7[%c1_32] : memref<2xf32, #tpu.memory_space<smem>>
    memref.store %76, %arg7[%c1_32] : memref<2xf32, #tpu.memory_space<smem>>
    %c0_i32_33 = arith.constant 0 : i32
    %78 = arith.cmpi eq, %arg0, %c0_i32_33 : i32
    %79 = arith.extui %78 : i1 to i32
    %c0_i32_34 = arith.constant 0 : i32
    %80 = arith.cmpi ne, %79, %c0_i32_34 : i32
    scf.if %80 {
      %c0_35 = arith.constant 0 : index
      %81 = memref.load %arg7[%c0_35] : memref<2xf32, #tpu.memory_space<smem>>
      %c0_36 = arith.constant 0 : index
      %82 = memref.load %arg5[%c0_36] : memref<1xf32, #tpu.memory_space<smem>>
      memref.store %81, %arg5[%c0_36] : memref<1xf32, #tpu.memory_space<smem>>
      %c1_37 = arith.constant 1 : index
      %83 = memref.load %arg7[%c1_37] : memref<2xf32, #tpu.memory_space<smem>>
      %c0_38 = arith.constant 0 : index
      %84 = memref.load %arg6[%c0_38] : memref<1xf32, #tpu.memory_space<smem>>
      memref.store %83, %arg6[%c0_38] : memref<1xf32, #tpu.memory_space<smem>>
    } else {
    }
    return
  }
  func.func @transform_0(%arg0: i32) -> (i32, i32, i32) {
    %c0_i32 = arith.constant 0 : i32
    %c0_i32_0 = arith.constant 0 : i32
    %c0_i32_1 = arith.constant 0 : i32
    return %arg0, %c0_i32, %c0_i32_0 : i32, i32, i32
  }
  func.func @transform_1(%arg0: i32) -> (i32, i32, i32) {
    %c0_i32 = arith.constant 0 : i32
    %c0_i32_0 = arith.constant 0 : i32
    %c0_i32_1 = arith.constant 0 : i32
    return %arg0, %c0_i32, %c0_i32_0 : i32, i32, i32
  }
  func.func @transform_2(%arg0: i32) -> (i32, i32, i32) {
    %c0_i32 = arith.constant 0 : i32
    %c0_i32_0 = arith.constant 0 : i32
    %c0_i32_1 = arith.constant 0 : i32
    return %arg0, %c0_i32, %c0_i32_0 : i32, i32, i32
  }
  func.func @transform_3(%arg0: i32) -> (i32, i32, i32) {
    %c0_i32 = arith.constant 0 : i32
    %c0_i32_0 = arith.constant 0 : i32
    %c0_i32_1 = arith.constant 0 : i32
    return %arg0, %c0_i32, %c0_i32_0 : i32, i32, i32
  }
  func.func @transform_4(%arg0: i32) -> i32 {
    %c0_i32 = arith.constant 0 : i32
    %c0_i32_0 = arith.constant 0 : i32
    return %c0_i32 : i32
  }
  func.func @transform_5(%arg0: i32) -> i32 {
    %c0_i32 = arith.constant 0 : i32
    %c0_i32_0 = arith.constant 0 : i32
    return %c0_i32 : i32
  }
}

</mosaic_0001>

<llo_original>
// kernel: tpu_custom_call.1
$region0: #{tpu_custom_call.1}
  #allocation0 [shape = 'u32[]', space=smem, size = 0x4, offset = 0x4, fixed_abs, tag = 'smem constant byte address 0x4 - core index']
  #allocation1 [shape = 'u32[144,128]{1,0:T(1,128)}', space=vmem, size = 0x12000, scoped, tag = 'internal scratch']
  #allocation2 [shape = 'f32[2]{0:T(128)}', space=smem, size = 0x200, scoped, tag = 'scratch operand']
  %s0 = inlined_call_operand.hbm [shape: f32[6,8,64], index: 0, kind: input, shape index: {}]
  %s1 = inlined_call_operand.hbm [shape: s32[6,1,64], index: 1, kind: input, shape index: {}]
  %s2 = inlined_call_operand.hbm [shape: f32[6,4,64], index: 2, kind: input, shape index: {}]
  %s3 = inlined_call_operand.hbm [shape: f32[6,4,64], index: 3, kind: input, shape index: {}]
  %s4 = inlined_call_operand.hbm [shape: f32[1], index: 4, kind: output, shape index: {0}]
  %s5 = inlined_call_operand.hbm [shape: f32[1], index: 5, kind: output, shape index: {1}]
  %6 = xla_tuple %s4, %s5
  %s7 = sld [smem:[#allocation0]]
  $region58: #{tpu_custom_call.1} parent=0
    _
  %s9 = ssub.s32 1, %s7
  %s10 = scalar_select 0, %s9, %s7
  $region1: #{tpu_custom_call.1} parent=0
    #allocation3 [shape = 'u8[24576]{0}', space=vmem, size = 0x6000, scoped, tag = 'input window, operand 0, single buffered']
    #allocation4 [shape = 's32[1]{0}', space=sflag, size = 0x4, scoped, tag = 'scoped memory for tpu_custom_call.1']
    #allocation5 [shape = 's32[1]{0}', space=sflag, size = 0x4, scoped, tag = 'scoped memory for tpu_custom_call.1']
    #allocation6 [shape = 'u8[3072]{0}', space=vmem, size = 0xc00, scoped, tag = 'input window, operand 1, single buffered']
    #allocation7 [shape = 's32[1]{0}', space=sflag, size = 0x4, scoped, tag = 'scoped memory for tpu_custom_call.1']
    #allocation8 [shape = 'u8[12288]{0}', space=vmem, size = 0x3000, scoped, tag = 'input window, operand 2, single buffered']
    #allocation9 [shape = 'u8[12288]{0}', space=vmem, size = 0x3000, scoped, tag = 'input window, operand 3, single buffered']
    #allocation10 [shape = 's32[1]{0}', space=sflag, size = 0x4, scoped, tag = 'scoped memory for tpu_custom_call.1']
    #allocation11 [shape = 'u8[512]{0}', space=smem, size = 0x200, scoped, tag = 'output window, operand 0, single buffered']
    #allocation12 [shape = 'u8[512]{0}', space=smem, size = 0x200, scoped, tag = 'output window, operand 1, single buffered']
    #allocation13 [shape = 's32[1]{0}', space=sflag, size = 0x4, scoped, tag = 'scoped memory for tpu_custom_call.1']
    %11 = vsyncpa [#allocation4], 0
    %12 = vsyncpa [#allocation7], 0
    %13 = vsyncpa [#allocation10], 0
    %14 = vsyncpa [#allocation5], 0
    %15 = vsyncpa [#allocation13], 0
    // Predicated region
    $region2: #{tpu_custom_call.1} parent=1 // pred_check
      _
    $region3: #{tpu_custom_call.1} parent=1 // pred_check_branch
      %17 = sbr.rel (0) target = $region5
    $region4: #{tpu_custom_call.1} parent=1 // pred_region
      %s19 = ssub.s32 768, 768
      %20 = vsyncadd [#allocation4], %s19
      %s21 = sshll.u32 [#allocation3], 4
      %s22 = int_to_ptr.vmem [resolvable:$true] %s21
      %27 = dma.hbm_to_vmem [thread:$0]  %s0, 768, %s22, [#allocation4], 128, 128, 8
    $region5: #{tpu_custom_call.1} parent=1 // pred_fallthru
      _
    // Predicated region
    $region6: #{tpu_custom_call.1} parent=1 // pred_check
      _
    $region7: #{tpu_custom_call.1} parent=1 // pred_check_branch
      %29 = sbr.rel (0) target = $region9
    $region8: #{tpu_custom_call.1} parent=1 // pred_region
      %s31 = ssub.s32 96, 96
      %32 = vsyncadd [#allocation7], %s31
      %s33 = sshll.u32 [#allocation6], 4
      %s34 = int_to_ptr.vmem [resolvable:$true] %s33
      %39 = dma.hbm_to_vmem [thread:$0]  %s1, 96, %s34, [#allocation7], 16, 16, 1
    $region9: #{tpu_custom_call.1} parent=1 // pred_fallthru
      _
    // Predicated region
    $region10: #{tpu_custom_call.1} parent=1 // pred_check
      _
    $region11: #{tpu_custom_call.1} parent=1 // pred_check_branch
      %41 = sbr.rel (0) target = $region13
    $region12: #{tpu_custom_call.1} parent=1 // pred_region
      %s43 = ssub.s32 384, 384
      %44 = vsyncadd [#allocation7], %s43
      %s45 = sshll.u32 [#allocation8], 4
      %s46 = int_to_ptr.vmem [resolvable:$true] %s45
      %51 = dma.hbm_to_vmem [thread:$0]  %s2, 384, %s46, [#allocation7], 64, 64, 4
    $region13: #{tpu_custom_call.1} parent=1 // pred_fallthru
      _
    // Predicated region
    $region14: #{tpu_custom_call.1} parent=1 // pred_check
      _
    $region15: #{tpu_custom_call.1} parent=1 // pred_check_branch
      %53 = sbr.rel (0) target = $region17
    $region16: #{tpu_custom_call.1} parent=1 // pred_region
      %s55 = ssub.s32 384, 384
      %56 = vsyncadd [#allocation10], %s55
      %s57 = sshll.u32 [#allocation9], 4
      %s58 = int_to_ptr.vmem [resolvable:$true] %s57
      %63 = dma.hbm_to_vmem [thread:$0]  %s3, 384, %s58, [#allocation10], 64, 64, 4
    $region17: #{tpu_custom_call.1} parent=1 // pred_fallthru
      _
    // Predicated region
    $region18: #{tpu_custom_call.1} parent=1 // pred_check
      _
    $region19: #{tpu_custom_call.1} parent=1 // pred_check_branch
      %65 = sbr.rel (0) target = $region21
    $region20: #{tpu_custom_call.1} parent=1 // pred_region
      %66 = dma.done [#allocation4], 768
    $region21: #{tpu_custom_call.1} parent=1 // pred_fallthru
      _
    // Predicated region
    $region22: #{tpu_custom_call.1} parent=1 // pred_check
      _
    $region23: #{tpu_custom_call.1} parent=1 // pred_check_branch
      %68 = sbr.rel (0) target = $region25
    $region24: #{tpu_custom_call.1} parent=1 // pred_region
      %69 = dma.done [#allocation7], 96
    $region25: #{tpu_custom_call.1} parent=1 // pred_fallthru
      _
    // Predicated region
    $region26: #{tpu_custom_call.1} parent=1 // pred_check
      _
    $region27: #{tpu_custom_call.1} parent=1 // pred_check_branch
      %71 = sbr.rel (0) target = $region29
    $region28: #{tpu_custom_call.1} parent=1 // pred_region
      %72 = dma.done [#allocation7], 384
    $region29: #{tpu_custom_call.1} parent=1 // pred_fallthru
      _
    // Predicated region
    $region30: #{tpu_custom_call.1} parent=1 // pred_check
      _
    $region31: #{tpu_custom_call.1} parent=1 // pred_check_branch
      %74 = sbr.rel (0) target = $region33
    $region32: #{tpu_custom_call.1} parent=1 // pred_region
      %75 = dma.done [#allocation10], 384
    $region33: #{tpu_custom_call.1} parent=1 // pred_fallthru
      _
    %p76 = scmp.eq.s32.totalorder 0, 0
    // Predicated region
    $region34: #{tpu_custom_call.1} parent=1 // pred_check
      %p77 = pneg %p76
    $region35: #{tpu_custom_call.1} parent=1 // pred_check_branch
      %79 = sbr.rel (%p77) target = $region37
    $region36: #{tpu_custom_call.1} parent=1 // pred_region
      %s80 = scalar_lea.smem [#allocation2], 0
      %81 = sst [smem:[%s80]] 0.0
      %s82 = scalar_lea.smem [#allocation2], 1
      %83 = sst [smem:[%s82]] 0.0
    $region37: #{tpu_custom_call.1} parent=1 // pred_fallthru
      _
    %v84 = vld [vmem:[#allocation3] sm:$0xff]
    %v85 = vld [vmem:[#allocation3 + $0x8] sm:$0xff]
    %v86 = vld [vmem:[#allocation3 + $0x10] sm:$0xff]
    %v87 = vld [vmem:[#allocation3 + $0x18] sm:$0xff]
    %v88 = vld [vmem:[#allocation3 + $0x20] sm:$0xff]
    %v89 = vld [vmem:[#allocation3 + $0x28] sm:$0xff]
    %v90 = vld [vmem:[#allocation6] sm:$0x1]
    %v91 = vld [vmem:[#allocation6 + $0x1] sm:$0x1]
    %v92 = vld [vmem:[#allocation6 + $0x2] sm:$0x1]
    %v93 = vld [vmem:[#allocation6 + $0x3] sm:$0x1]
    %v94 = vld [vmem:[#allocation6 + $0x4] sm:$0x1]
    %v95 = vld [vmem:[#allocation6 + $0x5] sm:$0x1]
    %v96 = vlaneseq
    %v97 = vshrl.u32 %v96, 7
    %v98 = vlaneseq
    %v99 = vshrl.u32 %v98, 7
    %v100 = vsub.s32 0, %v99
    %v101 = vrot.slane %v90, %v100
    %v102 = vlaneseq
    %v103 = vshrl.u32 %v102, 7
    %v104 = vsub.s32 0, %v103
    %v105 = vrot.slane %v91, %v104
    %v106 = vlaneseq
    %v107 = vshrl.u32 %v106, 7
    %v108 = vsub.s32 0, %v107
    %v109 = vrot.slane %v92, %v108
    %v110 = vlaneseq
    %v111 = vshrl.u32 %v110, 7
    %v112 = vsub.s32 0, %v111
    %v113 = vrot.slane %v93, %v112
    %v114 = vlaneseq
    %v115 = vshrl.u32 %v114, 7
    %v116 = vsub.s32 0, %v115
    %v117 = vrot.slane %v94, %v116
    %v118 = vlaneseq
    %v119 = vshrl.u32 %v118, 7
    %v120 = vsub.s32 0, %v119
    %v121 = vrot.slane %v95, %v120
    %vm122 = vcmp.eq.s32.totalorder %v97, %v101
    %vm123 = vcmp.eq.s32.totalorder %v97, %v105
    %vm124 = vcmp.eq.s32.totalorder %v97, %v109
    %vm125 = vcmp.eq.s32.totalorder %v97, %v113
    %vm126 = vcmp.eq.s32.totalorder %v97, %v117
    %vm127 = vcmp.eq.s32.totalorder %v97, %v121
    %vm128 = vcmp.ge.s32.totalorder %v90, 0
    %vm129 = vcmp.ge.s32.totalorder %v91, 0
    %vm130 = vcmp.ge.s32.totalorder %v92, 0
    %vm131 = vcmp.ge.s32.totalorder %v93, 0
    %vm132 = vcmp.ge.s32.totalorder %v94, 0
    %vm133 = vcmp.ge.s32.totalorder %v95, 0
    %v134 = vsel %vm128, 1, 0
    %v135 = vsel %vm129, 1, 0
    %v136 = vsel %vm130, 1, 0
    %v137 = vsel %vm131, 1, 0
    %v138 = vsel %vm132, 1, 0
    %v139 = vsel %vm133, 1, 0
    %v140 = vlaneseq
    %v141 = vshrl.u32 %v140, 7
    %v142 = vsub.s32 0, %v141
    %v143 = vrot.slane %v134, %v142
    %v144 = vlaneseq
    %v145 = vshrl.u32 %v144, 7
    %v146 = vsub.s32 0, %v145
    %v147 = vrot.slane %v135, %v146
    %v148 = vlaneseq
    %v149 = vshrl.u32 %v148, 7
    %v150 = vsub.s32 0, %v149
    %v151 = vrot.slane %v136, %v150
    %v152 = vlaneseq
    %v153 = vshrl.u32 %v152, 7
    %v154 = vsub.s32 0, %v153
    %v155 = vrot.slane %v137, %v154
    %v156 = vlaneseq
    %v157 = vshrl.u32 %v156, 7
    %v158 = vsub.s32 0, %v157
    %v159 = vrot.slane %v138, %v158
    %v160 = vlaneseq
    %v161 = vshrl.u32 %v160, 7
    %v162 = vsub.s32 0, %v161
    %v163 = vrot.slane %v139, %v162
    %vm164 = vcmp.eq.s32.totalorder %v143, 1
    %vm165 = vcmp.eq.s32.totalorder %v147, 1
    %vm166 = vcmp.eq.s32.totalorder %v151, 1
    %vm167 = vcmp.eq.s32.totalorder %v155, 1
    %vm168 = vcmp.eq.s32.totalorder %v159, 1
    %vm169 = vcmp.eq.s32.totalorder %v163, 1
    %vm170 = vmand %vm122, %vm164
    %vm171 = vmand %vm123, %vm165
    %vm172 = vmand %vm124, %vm166
    %vm173 = vmand %vm125, %vm167
    %vm174 = vmand %vm126, %vm168
    %vm175 = vmand %vm127, %vm169
    %v176 = vsel %vm170, 0.9111111, 0.011111111
    %v177 = vsel %vm171, 0.9111111, 0.011111111
    %v178 = vsel %vm172, 0.9111111, 0.011111111
    %v179 = vsel %vm173, 0.9111111, 0.011111111
    %v180 = vsel %vm174, 0.9111111, 0.011111111
    %v181 = vsel %vm175, 0.9111111, 0.011111111
    %v182 = vsub.f32 0.0, %v84
    %v183 = vsub.f32 0.0, %v85
    %v184 = vsub.f32 0.0, %v86
    %v185 = vsub.f32 0.0, %v87
    %v186 = vsub.f32 0.0, %v88
    %v187 = vsub.f32 0.0, %v89
    %v188 = vmax.f32 %v182, 0.0
    %v189 = vmax.f32 %v183, 0.0
    %v190 = vmax.f32 %v184, 0.0
    %v191 = vmax.f32 %v185, 0.0
    %v192 = vmax.f32 %v186, 0.0
    %v193 = vmax.f32 %v187, 0.0
    %v194 = vand.u32 2147483647, %v84
    %v195 = vand.u32 2147483647, %v85
    %v196 = vand.u32 2147483647, %v86
    %v197 = vand.u32 2147483647, %v87
    %v198 = vand.u32 2147483647, %v88
    %v199 = vand.u32 2147483647, %v89
    %v200 = vsub.f32 0.0, %v194
    %v201 = vsub.f32 0.0, %v195
    %v202 = vsub.f32 0.0, %v196
    %v203 = vsub.f32 0.0, %v197
    %v204 = vsub.f32 0.0, %v198
    %v205 = vsub.f32 0.0, %v199
    %v206 = vmul.f32 %v200, 1.442695
    %v207 = vpow.pop %v206
    %v208 = vmul.f32 %v201, 1.442695
    %v209 = vpow.pop %v208
    %v210 = vmul.f32 %v202, 1.442695
    %v211 = vpow.pop %v210
    %v212 = vmul.f32 %v203, 1.442695
    %v213 = vpow.pop %v212
    %v214 = vmul.f32 %v204, 1.442695
    %v215 = vpow.pop %v214
    %v216 = vmul.f32 %v205, 1.442695
    %v217 = vpow.pop %v216
    %v218 = vadd.f32 %v207, 1.0
    %v219 = vadd.f32 %v209, 1.0
    %v220 = vadd.f32 %v211, 1.0
    %v221 = vadd.f32 %v213, 1.0
    %v222 = vadd.f32 %v215, 1.0
    %v223 = vadd.f32 %v217, 1.0
    %v224 = vlog2.pop %v218
    %v225 = vmul.f32 %v224, 0.6931472
    %v226 = vlog2.pop %v219
    %v227 = vmul.f32 %v226, 0.6931472
    %v228 = vlog2.pop %v220
    %v229 = vmul.f32 %v228, 0.6931472
    %v230 = vlog2.pop %v221
    %v231 = vmul.f32 %v230, 0.6931472
    %v232 = vlog2.pop %v222
    %v233 = vmul.f32 %v232, 0.6931472
    %v234 = vlog2.pop %v223
    %v235 = vmul.f32 %v234, 0.6931472
    %v236 = vadd.f32 %v188, %v225
    %v237 = vadd.f32 %v189, %v227
    %v238 = vadd.f32 %v190, %v229
    %v239 = vadd.f32 %v191, %v231
    %v240 = vadd.f32 %v192, %v233
    %v241 = vadd.f32 %v193, %v235
    %v242 = vsub.f32 1.0, %v176
    %v243 = vsub.f32 1.0, %v177
    %v244 = vsub.f32 1.0, %v178
    %v245 = vsub.f32 1.0, %v179
    %v246 = vsub.f32 1.0, %v180
    %v247 = vsub.f32 1.0, %v181
    %v248 = vmul.f32 %v84, %v242
    %v249 = vmul.f32 %v85, %v243
    %v250 = vmul.f32 %v86, %v244
    %v251 = vmul.f32 %v87, %v245
    %v252 = vmul.f32 %v88, %v246
    %v253 = vmul.f32 %v89, %v247
    %v254 = vadd.f32 %v236, %v248
    %v255 = vadd.f32 %v237, %v249
    %v256 = vadd.f32 %v238, %v250
    %v257 = vadd.f32 %v239, %v251
    %v258 = vadd.f32 %v240, %v252
    %v259 = vadd.f32 %v241, %v253
    %v260 = vmul.f32 %v176, %v84
    %v261 = vmul.f32 %v177, %v85
    %v262 = vmul.f32 %v178, %v86
    %v263 = vmul.f32 %v179, %v87
    %v264 = vmul.f32 %v180, %v88
    %v265 = vmul.f32 %v181, %v89
    %v266 = vadd.f32 %v260, %v236
    %v267 = vadd.f32 %v261, %v237
    %v268 = vadd.f32 %v262, %v238
    %v269 = vadd.f32 %v263, %v239
    %v270 = vadd.f32 %v264, %v240
    %v271 = vadd.f32 %v265, %v241
    %v272 = vmul.f32 %v266, -2.0
    %v273 = vmul.f32 %v267, -2.0
    %v274 = vmul.f32 %v268, -2.0
    %v275 = vmul.f32 %v269, -2.0
    %v276 = vmul.f32 %v270, -2.0
    %v277 = vmul.f32 %v271, -2.0
    %v278 = vmul.f32 %v272, 1.442695
    %v279 = vpow.pop %v278
    %v280 = vmul.f32 %v273, 1.442695
    %v281 = vpow.pop %v280
    %v282 = vmul.f32 %v274, 1.442695
    %v283 = vpow.pop %v282
    %v284 = vmul.f32 %v275, 1.442695
    %v285 = vpow.pop %v284
    %v286 = vmul.f32 %v276, 1.442695
    %v287 = vpow.pop %v286
    %v288 = vmul.f32 %v277, 1.442695
    %v289 = vpow.pop %v288
    %v290 = vmul.f32 %v279, %v254
    %v291 = vmul.f32 %v281, %v255
    %v292 = vmul.f32 %v283, %v256
    %v293 = vmul.f32 %v285, %v257
    %v294 = vmul.f32 %v287, %v258
    %v295 = vmul.f32 %v289, %v259
    %v296 = vsel %vm170, 0.25, 0.75
    %v297 = vsel %vm171, 0.25, 0.75
    %v298 = vsel %vm172, 0.25, 0.75
    %v299 = vsel %vm173, 0.25, 0.75
    %v300 = vsel %vm174, 0.25, 0.75
    %v301 = vsel %vm175, 0.25, 0.75
    %v302 = vmul.f32 %v290, %v296
    %v303 = vmul.f32 %v291, %v297
    %v304 = vmul.f32 %v292, %v298
    %v305 = vmul.f32 %v293, %v299
    %v306 = vmul.f32 %v294, %v300
    %v307 = vmul.f32 %v295, %v301
    %vm308 = vcmp.ne.s32.totalorder %v90, 4294967294
    %vm309 = vcmp.ne.s32.totalorder %v91, 4294967294
    %vm310 = vcmp.ne.s32.totalorder %v92, 4294967294
    %vm311 = vcmp.ne.s32.totalorder %v93, 4294967294
    %vm312 = vcmp.ne.s32.totalorder %v94, 4294967294
    %vm313 = vcmp.ne.s32.totalorder %v95, 4294967294
    %v314 = vsel %vm308, 1, 0
    %v315 = vsel %vm309, 1, 0
    %v316 = vsel %vm310, 1, 0
    %v317 = vsel %vm311, 1, 0
    %v318 = vsel %vm312, 1, 0
    %v319 = vsel %vm313, 1, 0
    %v320 = vlaneseq
    %v321 = vshrl.u32 %v320, 7
    %v322 = vsub.s32 0, %v321
    %v323 = vrot.slane %v314, %v322
    %v324 = vlaneseq
    %v325 = vshrl.u32 %v324, 7
    %v326 = vsub.s32 0, %v325
    %v327 = vrot.slane %v315, %v326
    %v328 = vlaneseq
    %v329 = vshrl.u32 %v328, 7
    %v330 = vsub.s32 0, %v329
    %v331 = vrot.slane %v316, %v330
    %v332 = vlaneseq
    %v333 = vshrl.u32 %v332, 7
    %v334 = vsub.s32 0, %v333
    %v335 = vrot.slane %v317, %v334
    %v336 = vlaneseq
    %v337 = vshrl.u32 %v336, 7
    %v338 = vsub.s32 0, %v337
    %v339 = vrot.slane %v318, %v338
    %v340 = vlaneseq
    %v341 = vshrl.u32 %v340, 7
    %v342 = vsub.s32 0, %v341
    %v343 = vrot.slane %v319, %v342
    %vm344 = vcmp.eq.s32.totalorder %v323, 1
    %vm345 = vcmp.eq.s32.totalorder %v327, 1
    %vm346 = vcmp.eq.s32.totalorder %v331, 1
    %vm347 = vcmp.eq.s32.totalorder %v335, 1
    %vm348 = vcmp.eq.s32.totalorder %v339, 1
    %vm349 = vcmp.eq.s32.totalorder %v343, 1
    %v350 = vsel %vm344, %v302, 0.0
    %v351 = vsel %vm345, %v303, 0.0
    %v352 = vsel %vm346, %v304, 0.0
    %v353 = vsel %vm347, %v305, 0.0
    %v354 = vsel %vm348, %v306, 0.0
    %v355 = vsel %vm349, %v307, 0.0
    %s356 = sld [smem:[#allocation2]]
    %vm357 = vcmask 523264
    %v358 = vsel %vm357, %v350, 0.0
    %v359 = vsel %vm357, %v351, 0.0
    %v360 = vadd.f32 %v358, %v359
    %v361 = vsel %vm357, %v352, 0.0
    %v362 = vadd.f32 %v360, %v361
    %v363 = vsel %vm357, %v353, 0.0
    %v364 = vadd.f32 %v362, %v363
    %v365 = vsel %vm357, %v354, 0.0
    %v366 = vadd.f32 %v364, %v365
    %v367 = vsel %vm357, %v355, 0.0
    %v368 = vadd.f32 %v366, %v367
    %369 = vadd.xlane.f32.xlu0 %v368
    %v370 = vpop.xlane.xlu0 %369
    %v371 = vrot.slane %v370, 4
    %v372 = vadd.f32 %v370, %v371
    %v373 = vrot.slane %v372, 2
    %v374 = vadd.f32 %v372, %v373
    %v375 = vrot.slane %v374, 1
    %v376 = vadd.f32 %v374, %v375
    %s377 = vtos %v376
    %s378 = sadd.f32 %s356, %s377
    %s379 = scalar_lea.smem [#allocation2], 0
    %380 = sst [smem:[%s379]] %s378
    %v381 = vld [vmem:[#allocation8] sm:$0xf]
    %v382 = vld [vmem:[#allocation8 + $0x4] sm:$0xf]
    %v383 = vld [vmem:[#allocation8 + $0x8] sm:$0xf]
    %v384 = vld [vmem:[#allocation8 + $0xc] sm:$0xf]
    %v385 = vld [vmem:[#allocation8 + $0x10] sm:$0xf]
    %v386 = vld [vmem:[#allocation8 + $0x14] sm:$0xf]
    %v387 = vld [vmem:[#allocation9] sm:$0xf]
    %v388 = vld [vmem:[#allocation9 + $0x4] sm:$0xf]
    %v389 = vld [vmem:[#allocation9 + $0x8] sm:$0xf]
    %v390 = vld [vmem:[#allocation9 + $0xc] sm:$0xf]
    %v391 = vld [vmem:[#allocation9 + $0x10] sm:$0xf]
    %v392 = vld [vmem:[#allocation9 + $0x14] sm:$0xf]
    %v393 = vsub.f32 %v387, %v381
    %v394 = vsub.f32 %v388, %v382
    %v395 = vsub.f32 %v389, %v383
    %v396 = vsub.f32 %v390, %v384
    %v397 = vsub.f32 %v391, %v385
    %v398 = vsub.f32 %v392, %v386
    %v399 = vand.u32 2147483647, %v393
    %v400 = vand.u32 2147483647, %v394
    %v401 = vand.u32 2147483647, %v395
    %v402 = vand.u32 2147483647, %v396
    %v403 = vand.u32 2147483647, %v397
    %v404 = vand.u32 2147483647, %v398
    %v405 = vmin.f32 %v399, 0.1
    %v406 = vmin.f32 %v400, 0.1
    %v407 = vmin.f32 %v401, 0.1
    %v408 = vmin.f32 %v402, 0.1
    %v409 = vmin.f32 %v403, 0.1
    %v410 = vmin.f32 %v404, 0.1
    %v411 = vmul.f32 %v405, 0.5
    %v412 = vmul.f32 %v406, 0.5
    %v413 = vmul.f32 %v407, 0.5
    %v414 = vmul.f32 %v408, 0.5
    %v415 = vmul.f32 %v409, 0.5
    %v416 = vmul.f32 %v410, 0.5
    %v417 = vmul.f32 %v411, %v405
    %v418 = vmul.f32 %v412, %v406
    %v419 = vmul.f32 %v413, %v407
    %v420 = vmul.f32 %v414, %v408
    %v421 = vmul.f32 %v415, %v409
    %v422 = vmul.f32 %v416, %v410
    %v423 = vsub.f32 %v399, %v405
    %v424 = vsub.f32 %v400, %v406
    %v425 = vsub.f32 %v401, %v407
    %v426 = vsub.f32 %v402, %v408
    %v427 = vsub.f32 %v403, %v409
    %v428 = vsub.f32 %v404, %v410
    %v429 = vmul.f32 %v423, 0.1
    %v430 = vmul.f32 %v424, 0.1
    %v431 = vmul.f32 %v425, 0.1
    %v432 = vmul.f32 %v426, 0.1
    %v433 = vmul.f32 %v427, 0.1
    %v434 = vmul.f32 %v428, 0.1
    %v435 = vadd.f32 %v417, %v429
    %v436 = vadd.f32 %v418, %v430
    %v437 = vadd.f32 %v419, %v431
    %v438 = vadd.f32 %v420, %v432
    %v439 = vadd.f32 %v421, %v433
    %v440 = vadd.f32 %v422, %v434
    %s441 = sld [smem:[#allocation2 + $0x1]]
    %vm442 = vcmp.ne.f32.partialorder %v387, 0.0
    %vm443 = vcmp.ne.f32.partialorder %v388, 0.0
    %vm444 = vcmp.ne.f32.partialorder %v389, 0.0
    %vm445 = vcmp.ne.f32.partialorder %v390, 0.0
    %vm446 = vcmp.ne.f32.partialorder %v391, 0.0
    %vm447 = vcmp.ne.f32.partialorder %v392, 0.0
    %v448 = vsel %vm442, %v435, 0.0
    %v449 = vsel %vm443, %v436, 0.0
    %v450 = vsel %vm444, %v437, 0.0
    %v451 = vsel %vm445, %v438, 0.0
    %v452 = vsel %vm446, %v439, 0.0
    %v453 = vsel %vm447, %v440, 0.0
    %vm454 = vcmask 519168
    %v455 = vsel %vm454, %v448, 0.0
    %v456 = vsel %vm454, %v449, 0.0
    %v457 = vadd.f32 %v455, %v456
    %v458 = vsel %vm454, %v450, 0.0
    %v459 = vadd.f32 %v457, %v458
    %v460 = vsel %vm454, %v451, 0.0
    %v461 = vadd.f32 %v459, %v460
    %v462 = vsel %vm454, %v452, 0.0
    %v463 = vadd.f32 %v461, %v462
    %v464 = vsel %vm454, %v453, 0.0
    %v465 = vadd.f32 %v463, %v464
    %466 = vadd.xlane.f32.xlu0 %v465
    %v467 = vpop.xlane.xlu0 %466
    %v468 = vrot.slane %v467, 4
    %v469 = vadd.f32 %v467, %v468
    %v470 = vrot.slane %v469, 2
    %v471 = vadd.f32 %v469, %v470
    %v472 = vrot.slane %v471, 1
    %v473 = vadd.f32 %v471, %v472
    %s474 = vtos %v473
    %s475 = sadd.f32 %s441, %s474
    %s476 = scalar_lea.smem [#allocation2], 1
    %477 = sst [smem:[%s476]] %s475
    // Predicated region
    $region38: #{tpu_custom_call.1} parent=1 // pred_check
      %p478 = pneg %p76
    $region39: #{tpu_custom_call.1} parent=1 // pred_check_branch
      %480 = sbr.rel (%p478) target = $region41
    $region40: #{tpu_custom_call.1} parent=1 // pred_region
      %s481 = sld [smem:[#allocation2]]
      %s482 = scalar_lea.smem [#allocation11], 0
      %483 = sst [smem:[%s482]] %s481
      %s484 = sld [smem:[#allocation2 + $0x1]]
      %s485 = scalar_lea.smem [#allocation12], 0
      %486 = sst [smem:[%s485]] %s484
    $region41: #{tpu_custom_call.1} parent=1 // pred_fallthru
      _
    // Predicated region
    $region42: #{tpu_custom_call.1} parent=1 // pred_check
      _
    $region43: #{tpu_custom_call.1} parent=1 // pred_check_branch
      %488 = sbr.rel (0) target = $region45
    $region44: #{tpu_custom_call.1} parent=1 // pred_region
      %s490 = ssub.s32 16, 16
      %491 = vsyncadd [#allocation5], %s490
      %494 = dma.smem_to_hbm [#allocation11], 16, %s4, [#allocation5]
    $region45: #{tpu_custom_call.1} parent=1 // pred_fallthru
      _
    // Predicated region
    $region46: #{tpu_custom_call.1} parent=1 // pred_check
      _
    $region47: #{tpu_custom_call.1} parent=1 // pred_check_branch
      %496 = sbr.rel (0) target = $region49
    $region48: #{tpu_custom_call.1} parent=1 // pred_region
      %s498 = ssub.s32 16, 16
      %499 = vsyncadd [#allocation13], %s498
      %502 = dma.smem_to_hbm [#allocation12], 16, %s5, [#allocation13]
    $region49: #{tpu_custom_call.1} parent=1 // pred_fallthru
      _
    // Predicated region
    $region50: #{tpu_custom_call.1} parent=1 // pred_check
      _
    $region51: #{tpu_custom_call.1} parent=1 // pred_check_branch
      %504 = sbr.rel (0) target = $region53
    $region52: #{tpu_custom_call.1} parent=1 // pred_region
      %505 = dma.done [#allocation5], 16
    $region53: #{tpu_custom_call.1} parent=1 // pred_fallthru
      _
    // Predicated region
    $region54: #{tpu_custom_call.1} parent=1 // pred_check
      _
    $region55: #{tpu_custom_call.1} parent=1 // pred_check_branch
      %507 = sbr.rel (0) target = $region57
    $region56: #{tpu_custom_call.1} parent=1 // pred_region
      %508 = dma.done [#allocation13], 16
    $region57: #{tpu_custom_call.1} parent=1 // pred_fallthru
      _
    %509 = sfence
    %510 = vsyncpa [#allocation4], 1
    %511 = vsyncpa [#allocation7], 1
    %512 = vsyncpa [#allocation10], 1
    %513 = vsyncpa [#allocation5], 1
    %514 = vsyncpa [#allocation13], 1

</llo_original>
